<compile_context>
chip_gen: v7x
topology: tpu7x:2x2x1
jax: 0.10.0
libtpu: 0.0.40
codegen_flags: <defaults>
</compile_context>

<pallas_src>
import numpy as np
import jax
import jax.numpy as jnp
from jax.experimental import pallas as pl
from jax.experimental.pallas import tpu as pltpu


def _cdiv(a, b):
    return -(-a // b)


def residual_block_kernel(x_ref, w1_ref, s1_ref, t1_ref,
                          w2_ref, s2_ref, t2_ref, o_ref, mid_scr):
    tile_n, hp2, k1 = x_ref.shape            # (TILE_N, H+2, W*Cin), bf16
    wn = o_ref.shape[2]                      # W * Cout (lane-dense; == k1 here)
    h = hp2 - 2
    m = tile_n * h

    # Zero only the two H-halo rows of the bf16 scratch (full-lane stores);
    # the interior is fully overwritten below.  Done every step (cheap) so it
    # stays correct when the batch grid axis is sharded across TensorCores.
    zrow = jnp.zeros((tile_n, 1, wn), mid_scr.dtype)
    mid_scr[:, 0:1, :] = zrow
    mid_scr[:, h + 1:h + 2, :] = zrow

    # conv1: one (M, W*Cin) @ (W*Cin, W*Cout) MXU matmul per kh row.  The wrap
    # band absorbs kw shifts and W-edge padding, so every LHS is a contiguous
    # full-width slab read straight from the ref; K and N are both 128-aligned.
    # Accumulator chained from the first dot (no explicit zero init).
    acc1 = jnp.dot(x_ref[:, 0:h, :].reshape(m, k1), w1_ref[0],
                   preferred_element_type=jnp.float32)
    acc1 = acc1 + jnp.dot(x_ref[:, 1:h + 1, :].reshape(m, k1), w1_ref[1],
                          preferred_element_type=jnp.float32)
    acc1 = acc1 + jnp.dot(x_ref[:, 2:h + 2, :].reshape(m, k1), w1_ref[2],
                          preferred_element_type=jnp.float32)
    # BN1 (folded scale/shift incl. conv1 bias, pre-tiled to W*Cout) + ReLU.
    out1 = jnp.maximum(acc1 * s1_ref[...] + t1_ref[...], 0.0)

    # Stash conv1 activations (bf16) in the interior of the H-halo scratch.
    mid_scr[:, 1:h + 1, :] = out1.astype(mid_scr.dtype).reshape(tile_n, h, wn)

    # conv2 (same wrap-band scheme) + BN2.
    acc2 = jnp.dot(mid_scr[:, 0:h, :].reshape(m, wn), w2_ref[0],
                   preferred_element_type=jnp.float32)
    acc2 = acc2 + jnp.dot(mid_scr[:, 1:h + 1, :].reshape(m, wn), w2_ref[1],
                          preferred_element_type=jnp.float32)
    acc2 = acc2 + jnp.dot(mid_scr[:, 2:h + 2, :].reshape(m, wn), w2_ref[2],
                          preferred_element_type=jnp.float32)
    out2 = acc2 * s2_ref[...] + t2_ref[...]

    # Identity residual (bf16 input interior, full lane width) + ReLU.
    res = x_ref[:, 1:h + 1, :].reshape(m, k1).astype(jnp.float32)
    o_ref[...] = jnp.maximum(out2 + res, 0.0).reshape(tile_n, h, wn)


def _band_weight(w_oihw, W):
    """OIHW 3x3 conv weight -> wrap-band matmul weight (3, W*Cin, W*Cout).

    band[kh, w_in*Cin + ci, w_out*Cout + co] = w[co, ci, kh, kw] where
    w_in = w_out + kw - 1 (zero when out of [0, W)), so a pad-1 3x3 conv over
    one image row becomes a single lane-aligned matmul of the unpadded
    full-width row against this matrix.
    """
    cout, cin, kh, kw = w_oihw.shape
    assert kh == 3 and kw == 3
    w_hwio = jnp.transpose(w_oihw, (2, 3, 1, 0)).astype(jnp.float32)  # (3,3,Ci,Co)
    win = jnp.arange(W)[None, :, None]
    wout = jnp.arange(W)[None, None, :]
    kwi = jnp.arange(3)[:, None, None]
    sel = (win == wout + kwi - 1).astype(jnp.float32)   # (3, W, W), edges masked
    band = jnp.einsum('kpw,hkio->hpiwo', sel, w_hwio)   # (3, W, Cin, W, Cout)
    return band.reshape(3, W * cin, W * cout)


def _vmem_plan():
    """(block-bytes budget, vmem_limit_bytes or None) sized per TPU generation."""
    try:
        cap = getattr(pltpu.get_tpu_info(), "vmem_capacity_bytes", None)
    except Exception:
        cap = None
    if cap is None:
        return 16 * 1024 * 1024, None
    if cap >= 100 * 1024 * 1024:          # v5e / v6e: 128 MiB physical per core
        return 40 * 1024 * 1024, 64 * 1024 * 1024
    return 12 * 1024 * 1024, None         # v7x-class (64 MiB/core): default limit


def _pick_tile_n(N, H, W, Cin, Cout, budget):
    """tile_n targeting MXU M rows (tile_n*H >= 256) within the VMEM budget,
    while keeping >= 2 grid steps (when N >= 2) so both v7x TensorCores and
    the BlockSpec double-buffer pipeline get work."""
    per_n = ((H + 2) * W * Cin * 2 * 2        # bf16 input block, double-buffered
             + H * W * Cout * 4 * 2           # f32 output block, double-buffered
             + (H + 2) * W * Cout * 2         # bf16 conv1-activation scratch
             + 3 * H * W * Cout * 4)          # live f32 value temporaries
    weights = 2 * 3 * (W * Cin + W * Cout) * (W * Cout) * 2   # resident bf16 bands
    avail = max(budget - weights, per_n)
    vmem_cap = max(1, avail // per_n)
    target = max(1, _cdiv(256, H))            # m = tile_n * H >= 256
    tile = min(vmem_cap, target, N)
    if N >= 2:
        tile = min(tile, _cdiv(N, 2))         # keep at least 2 grid steps
    return max(1, int(tile))


def residual_block_pallas(x_nchw, params, eps=1e-5):
    (w1, b1, g1, be1, m1, v1,
     w2, b2, g2, be2, m2, v2) = params
    N, Cin, H, W = x_nchw.shape
    Cout = w1.shape[0]
    assert Cin == Cout, "identity residual requires in_channels == out_channels"
    C = Cout

    # NCHW -> NHWC, zero-pad H only (the W padding lives in the wrap-band
    # weights), flatten (W, C) onto the lane axis, ship as bf16.
    x = jnp.transpose(x_nchw, (0, 2, 3, 1)).astype(jnp.float32)
    xpad = jnp.pad(x, ((0, 0), (1, 1), (0, 0), (0, 0)))
    xpad = xpad.reshape(N, H + 2, W * Cin).astype(jnp.bfloat16)

    # Wrap-band (im2col-along-W) weights, bf16 for the MXU.
    w1_band = _band_weight(w1, W).astype(jnp.bfloat16)
    w2_band = _band_weight(w2, W).astype(jnp.bfloat16)

    # Fold BatchNorm (eval mode) + conv bias into per-channel scale/shift:
    #   bn(conv(x)+b) = conv(x)*s + ((b-m)*s + beta); pre-tile to W*C so the
    # broadcast in the kernel is a plain full-lane VPU multiply/add.
    s1 = (g1 / jnp.sqrt(v1 + eps)).astype(jnp.float32)
    t1 = (be1 + (b1 - m1) * s1).astype(jnp.float32)
    s2 = (g2 / jnp.sqrt(v2 + eps)).astype(jnp.float32)
    t2 = (be2 + (b2 - m2) * s2).astype(jnp.float32)
    s1t = jnp.tile(s1, W).reshape(1, W * C)
    t1t = jnp.tile(t1, W).reshape(1, W * C)
    s2t = jnp.tile(s2, W).reshape(1, W * C)
    t2t = jnp.tile(t2, W).reshape(1, W * C)

    budget, vmem_limit = _vmem_plan()
    tile_n = _pick_tile_n(N, H, W, Cin, C, budget)
    n_pad = _cdiv(N, tile_n) * tile_n
    if n_pad != N:
        xpad = jnp.pad(xpad, ((0, n_pad - N), (0, 0), (0, 0)))
    grid = (n_pad // tile_n,)

    cp = dict(dimension_semantics=("parallel",))
    if vmem_limit is not None:
        cp["vmem_limit_bytes"] = vmem_limit

    kern = pl.pallas_call(
        residual_block_kernel,
        out_shape=jax.ShapeDtypeStruct((n_pad, H, W * C), jnp.float32),
        grid_spec=pltpu.PrefetchScalarGridSpec(
            num_scalar_prefetch=0,
            grid=grid,
            in_specs=[
                pl.BlockSpec((tile_n, H + 2, W * Cin), lambda n: (n, 0, 0)),
                # weights / scales have constant block indices -> loaded once
                pl.BlockSpec((3, W * Cin, W * C), lambda n: (0, 0, 0)),
                pl.BlockSpec((1, W * C), lambda n: (0, 0)),
                pl.BlockSpec((1, W * C), lambda n: (0, 0)),
                pl.BlockSpec((3, W * C, W * C), lambda n: (0, 0, 0)),
                pl.BlockSpec((1, W * C), lambda n: (0, 0)),
                pl.BlockSpec((1, W * C), lambda n: (0, 0)),
            ],
            out_specs=pl.BlockSpec((tile_n, H, W * C), lambda n: (n, 0, 0)),
            scratch_shapes=[
                pltpu.VMEM((tile_n, H + 2, W * C), jnp.bfloat16)],
        ),
        compiler_params=pltpu.CompilerParams(**cp),
    )
    out = kern(xpad, w1_band, s1t, t1t, w2_band, s2t, t2t)
    out = out[:N].reshape(N, H, W, C)
    return jnp.transpose(out, (0, 3, 1, 2))  # back to NCHW


def residual_block_ref(x, params, eps=1e-5):
    """Pure-JAX reference matching the PyTorch forward (eval-mode BN)."""
    (w1, b1, g1, be1, m1, v1,
     w2, b2, g2, be2, m2, v2) = params

    def conv(x, w, b):
        y = jax.lax.conv_general_dilated(
            x, w, window_strides=(1, 1), padding=((1, 1), (1, 1)),
            dimension_numbers=('NCHW', 'OIHW', 'NCHW'))
        return y + b[None, :, None, None]

    def bn(y, g, be, m, v):
        return ((y - m[None, :, None, None])
                / jnp.sqrt(v[None, :, None, None] + eps)
                * g[None, :, None, None] + be[None, :, None, None])

    out = jax.nn.relu(bn(conv(x, w1, b1), g1, be1, m1, v1))
    out = bn(conv(out, w2, b2), g2, be2, m2, v2)
    return jax.nn.relu(out + x)


def make_params(key, c_in, c_out):
    ks = jax.random.split(key, 12)
    w1 = 0.1 * jax.random.normal(ks[0], (c_out, c_in, 3, 3), jnp.float32)
    b1 = 0.1 * jax.random.normal(ks[1], (c_out,), jnp.float32)
    g1 = 0.5 + jax.random.uniform(ks[2], (c_out,), jnp.float32)
    be1 = 0.1 * jax.random.normal(ks[3], (c_out,), jnp.float32)
    m1 = 0.1 * jax.random.normal(ks[4], (c_out,), jnp.float32)
    v1 = 0.5 + jax.random.uniform(ks[5], (c_out,), jnp.float32)
    w2 = 0.1 * jax.random.normal(ks[6], (c_out, c_out, 3, 3), jnp.float32)
    b2 = 0.1 * jax.random.normal(ks[7], (c_out,), jnp.float32)
    g2 = 0.5 + jax.random.uniform(ks[8], (c_out,), jnp.float32)
    be2 = 0.1 * jax.random.normal(ks[9], (c_out,), jnp.float32)
    m2 = 0.1 * jax.random.normal(ks[10], (c_out,), jnp.float32)
    v2 = 0.5 + jax.random.uniform(ks[11], (c_out,), jnp.float32)
    return (w1, b1, g1, be1, m1, v1, w2, b2, g2, be2, m2, v2)


if __name__ == "__main__":
    key = jax.random.PRNGKey(0)
    kx, kp = jax.random.split(key)
    # small shapes; in_channels == out_channels, W*C = 128 (one full lane row)
    N, C, H, W = 2, 8, 16, 16
    x = jax.random.normal(kx, (N, C, H, W), jnp.float32)
    params = make_params(kp, C, C)

    out = residual_block_pallas(x, params)
    out = jax.block_until_ready(out)

    ref = jax.block_until_ready(residual_block_ref(x, params))
    np.testing.assert_allclose(np.asarray(out), np.asarray(ref),
                               rtol=2e-2, atol=2e-2)
    print("KERNEL_OK")
</pallas_src>

<mosaic_0001>
module attributes {stable_mosaic.version = 11 : i64} {
  func.func @residual_block_kernel(%arg0: i32, %arg1: memref<1x18x128xbf16, #tpu.memory_space<vmem>>, %arg2: memref<3x128x128xbf16, #tpu.memory_space<vmem>>, %arg3: memref<1x128xf32, #tpu.memory_space<vmem>>, %arg4: memref<1x128xf32, #tpu.memory_space<vmem>>, %arg5: memref<3x128x128xbf16, #tpu.memory_space<vmem>>, %arg6: memref<1x128xf32, #tpu.memory_space<vmem>>, %arg7: memref<1x128xf32, #tpu.memory_space<vmem>>, %arg8: memref<1x16x128xf32, #tpu.memory_space<vmem>>, %arg9: memref<1x18x128xbf16, #tpu.memory_space<vmem>>) attributes {dimension_semantics = [#tpu.dimension_semantics<parallel>], iteration_bounds = array<i64: 2>, scalar_prefetch = 0 : i64, scratch_operands = 1 : i64, tpu.core_type = #tpu.core_type<tc>, window_params = [{transform_indices = @transform_0, window_bounds = array<i64: 1, 18, 128>}, {pipeline_mode = #tpu.pipeline_mode<synchronous>, transform_indices = @transform_1, window_bounds = array<i64: 3, 128, 128>}, {pipeline_mode = #tpu.pipeline_mode<synchronous>, transform_indices = @transform_2, window_bounds = array<i64: 1, 128>}, {pipeline_mode = #tpu.pipeline_mode<synchronous>, transform_indices = @transform_3, window_bounds = array<i64: 1, 128>}, {pipeline_mode = #tpu.pipeline_mode<synchronous>, transform_indices = @transform_4, window_bounds = array<i64: 3, 128, 128>}, {pipeline_mode = #tpu.pipeline_mode<synchronous>, transform_indices = @transform_5, window_bounds = array<i64: 1, 128>}, {pipeline_mode = #tpu.pipeline_mode<synchronous>, transform_indices = @transform_6, window_bounds = array<i64: 1, 128>}, {transform_indices = @transform_7, window_bounds = array<i64: 1, 16, 128>}]} {
    %cst = arith.constant 0.000000e+00 : bf16
    %0 = vector.broadcast %cst : bf16 to vector<1x1x128xbf16>
    %c0 = arith.constant 0 : index
    %c0_0 = arith.constant 0 : index
    %c0_1 = arith.constant 0 : index
    %1 = vector.load %arg9[%c0, %c0_0, %c0_1] : memref<1x18x128xbf16, #tpu.memory_space<vmem>>, vector<1x1x128xbf16>
    tpu.vector_store %arg9[%c0, %c0_0, %c0_1], %0 {strides = array<i32>} : memref<1x18x128xbf16, #tpu.memory_space<vmem>>, vector<1x1x128xbf16>,
    %c0_2 = arith.constant 0 : index
    %c17 = arith.constant 17 : index
    %c0_3 = arith.constant 0 : index
    %2 = vector.load %arg9[%c0_2, %c17, %c0_3] : memref<1x18x128xbf16, #tpu.memory_space<vmem>>, vector<1x1x128xbf16>
    tpu.vector_store %arg9[%c0_2, %c17, %c0_3], %0 {strides = array<i32>} : memref<1x18x128xbf16, #tpu.memory_space<vmem>>, vector<1x1x128xbf16>,
    %c0_4 = arith.constant 0 : index
    %c0_5 = arith.constant 0 : index
    %c0_6 = arith.constant 0 : index
    %3 = vector.load %arg1[%c0_4, %c0_5, %c0_6] : memref<1x18x128xbf16, #tpu.memory_space<vmem>>, vector<1x16x128xbf16>
    %4 = vector.shape_cast %3 : vector<1x16x128xbf16> to vector<16x128xbf16>
    %c0_7 = arith.constant 0 : index
    %c0_8 = arith.constant 0 : index
    %c0_9 = arith.constant 0 : index
    %5 = vector.load %arg2[%c0_7, %c0_8, %c0_9] : memref<3x128x128xbf16, #tpu.memory_space<vmem>>, vector<1x128x128xbf16>
    %6 = vector.shape_cast %5 : vector<1x128x128xbf16> to vector<128x128xbf16>
    %cst_10 = arith.constant dense<0.000000e+00> : vector<16x128xf32>
    %7 = tpu.matmul %4, %6, %cst_10 {dimension_numbers = #tpu.dot_dimension_numbers<[1], [0], [0], [1], [0, 0, 1, 1], [], []>} : vector<16x128xbf16>, vector<128x128xbf16>, vector<16x128xf32> -> vector<16x128xf32>
    %c0_11 = arith.constant 0 : index
    %c1 = arith.constant 1 : index
    %c0_12 = arith.constant 0 : index
    %8 = vector.load %arg1[%c0_11, %c1, %c0_12] : memref<1x18x128xbf16, #tpu.memory_space<vmem>>, vector<1x16x128xbf16>
    %9 = vector.shape_cast %8 : vector<1x16x128xbf16> to vector<16x128xbf16>
    %c1_13 = arith.constant 1 : index
    %c0_14 = arith.constant 0 : index
    %c0_15 = arith.constant 0 : index
    %10 = vector.load %arg2[%c1_13, %c0_14, %c0_15] : memref<3x128x128xbf16, #tpu.memory_space<vmem>>, vector<1x128x128xbf16>
    %11 = vector.shape_cast %10 : vector<1x128x128xbf16> to vector<128x128xbf16>
    %cst_16 = arith.constant dense<0.000000e+00> : vector<16x128xf32>
    %12 = tpu.matmul %9, %11, %cst_16 {dimension_numbers = #tpu.dot_dimension_numbers<[1], [0], [0], [1], [0, 0, 1, 1], [], []>} : vector<16x128xbf16>, vector<128x128xbf16>, vector<16x128xf32> -> vector<16x128xf32>
    %13 = arith.addf %7, %12 : vector<16x128xf32>
    %c0_17 = arith.constant 0 : index
    %c2 = arith.constant 2 : index
    %c0_18 = arith.constant 0 : index
    %14 = vector.load %arg1[%c0_17, %c2, %c0_18] : memref<1x18x128xbf16, #tpu.memory_space<vmem>>, vector<1x16x128xbf16>
    %15 = vector.shape_cast %14 : vector<1x16x128xbf16> to vector<16x128xbf16>
    %c2_19 = arith.constant 2 : index
    %c0_20 = arith.constant 0 : index
    %c0_21 = arith.constant 0 : index
    %16 = vector.load %arg2[%c2_19, %c0_20, %c0_21] : memref<3x128x128xbf16, #tpu.memory_space<vmem>>, vector<1x128x128xbf16>
    %17 = vector.shape_cast %16 : vector<1x128x128xbf16> to vector<128x128xbf16>
    %cst_22 = arith.constant dense<0.000000e+00> : vector<16x128xf32>
    %18 = tpu.matmul %15, %17, %cst_22 {dimension_numbers = #tpu.dot_dimension_numbers<[1], [0], [0], [1], [0, 0, 1, 1], [], []>} : vector<16x128xbf16>, vector<128x128xbf16>, vector<16x128xf32> -> vector<16x128xf32>
    %19 = arith.addf %13, %18 : vector<16x128xf32>
    %c0_23 = arith.constant 0 : index
    %c0_24 = arith.constant 0 : index
    %20 = vector.load %arg3[%c0_23, %c0_24] : memref<1x128xf32, #tpu.memory_space<vmem>>, vector<1x128xf32>
    %21 = vector.broadcast %20 : vector<1x128xf32> to vector<16x128xf32>
    %22 = arith.mulf %19, %21 : vector<16x128xf32>
    %c0_25 = arith.constant 0 : index
    %c0_26 = arith.constant 0 : index
    %23 = vector.load %arg4[%c0_25, %c0_26] : memref<1x128xf32, #tpu.memory_space<vmem>>, vector<1x128xf32>
    %24 = vector.broadcast %23 : vector<1x128xf32> to vector<16x128xf32>
    %25 = arith.addf %22, %24 : vector<16x128xf32>
    %cst_27 = arith.constant 0.000000e+00 : f32
    %26 = vector.broadcast %cst_27 : f32 to vector<16x128xf32>
    %27 = arith.maximumf %25, %26 : vector<16x128xf32>
    %28 = arith.truncf %27 : vector<16x128xf32> to vector<16x128xbf16>
    %29 = vector.shape_cast %28 : vector<16x128xbf16> to vector<1x16x128xbf16>
    %c0_28 = arith.constant 0 : index
    %c1_29 = arith.constant 1 : index
    %c0_30 = arith.constant 0 : index
    %30 = vector.load %arg9[%c0_28, %c1_29, %c0_30] : memref<1x18x128xbf16, #tpu.memory_space<vmem>>, vector<1x16x128xbf16>
    tpu.vector_store %arg9[%c0_28, %c1_29, %c0_30], %29 {strides = array<i32>} : memref<1x18x128xbf16, #tpu.memory_space<vmem>>, vector<1x16x128xbf16>,
    %c0_31 = arith.constant 0 : index
    %c0_32 = arith.constant 0 : index
    %c0_33 = arith.constant 0 : index
    %31 = vector.load %arg9[%c0_31, %c0_32, %c0_33] : memref<1x18x128xbf16, #tpu.memory_space<vmem>>, vector<1x16x128xbf16>
    %32 = vector.shape_cast %31 : vector<1x16x128xbf16> to vector<16x128xbf16>
    %c0_34 = arith.constant 0 : index
    %c0_35 = arith.constant 0 : index
    %c0_36 = arith.constant 0 : index
    %33 = vector.load %arg5[%c0_34, %c0_35, %c0_36] : memref<3x128x128xbf16, #tpu.memory_space<vmem>>, vector<1x128x128xbf16>
    %34 = vector.shape_cast %33 : vector<1x128x128xbf16> to vector<128x128xbf16>
    %cst_37 = arith.constant dense<0.000000e+00> : vector<16x128xf32>
    %35 = tpu.matmul %32, %34, %cst_37 {dimension_numbers = #tpu.dot_dimension_numbers<[1], [0], [0], [1], [0, 0, 1, 1], [], []>} : vector<16x128xbf16>, vector<128x128xbf16>, vector<16x128xf32> -> vector<16x128xf32>
    %c0_38 = arith.constant 0 : index
    %c1_39 = arith.constant 1 : index
    %c0_40 = arith.constant 0 : index
    %36 = vector.load %arg9[%c0_38, %c1_39, %c0_40] : memref<1x18x128xbf16, #tpu.memory_space<vmem>>, vector<1x16x128xbf16>
    %37 = vector.shape_cast %36 : vector<1x16x128xbf16> to vector<16x128xbf16>
    %c1_41 = arith.constant 1 : index
    %c0_42 = arith.constant 0 : index
    %c0_43 = arith.constant 0 : index
    %38 = vector.load %arg5[%c1_41, %c0_42, %c0_43] : memref<3x128x128xbf16, #tpu.memory_space<vmem>>, vector<1x128x128xbf16>
    %39 = vector.shape_cast %38 : vector<1x128x128xbf16> to vector<128x128xbf16>
    %cst_44 = arith.constant dense<0.000000e+00> : vector<16x128xf32>
    %40 = tpu.matmul %37, %39, %cst_44 {dimension_numbers = #tpu.dot_dimension_numbers<[1], [0], [0], [1], [0, 0, 1, 1], [], []>} : vector<16x128xbf16>, vector<128x128xbf16>, vector<16x128xf32> -> vector<16x128xf32>
    %41 = arith.addf %35, %40 : vector<16x128xf32>
    %c0_45 = arith.constant 0 : index
    %c2_46 = arith.constant 2 : index
    %c0_47 = arith.constant 0 : index
    %42 = vector.load %arg9[%c0_45, %c2_46, %c0_47] : memref<1x18x128xbf16, #tpu.memory_space<vmem>>, vector<1x16x128xbf16>
    %43 = vector.shape_cast %42 : vector<1x16x128xbf16> to vector<16x128xbf16>
    %c2_48 = arith.constant 2 : index
    %c0_49 = arith.constant 0 : index
    %c0_50 = arith.constant 0 : index
    %44 = vector.load %arg5[%c2_48, %c0_49, %c0_50] : memref<3x128x128xbf16, #tpu.memory_space<vmem>>, vector<1x128x128xbf16>
    %45 = vector.shape_cast %44 : vector<1x128x128xbf16> to vector<128x128xbf16>
    %cst_51 = arith.constant dense<0.000000e+00> : vector<16x128xf32>
    %46 = tpu.matmul %43, %45, %cst_51 {dimension_numbers = #tpu.dot_dimension_numbers<[1], [0], [0], [1], [0, 0, 1, 1], [], []>} : vector<16x128xbf16>, vector<128x128xbf16>, vector<16x128xf32> -> vector<16x128xf32>
    %47 = arith.addf %41, %46 : vector<16x128xf32>
    %c0_52 = arith.constant 0 : index
    %c0_53 = arith.constant 0 : index
    %48 = vector.load %arg6[%c0_52, %c0_53] : memref<1x128xf32, #tpu.memory_space<vmem>>, vector<1x128xf32>
    %49 = vector.broadcast %48 : vector<1x128xf32> to vector<16x128xf32>
    %50 = arith.mulf %47, %49 : vector<16x128xf32>
    %c0_54 = arith.constant 0 : index
    %c0_55 = arith.constant 0 : index
    %51 = vector.load %arg7[%c0_54, %c0_55] : memref<1x128xf32, #tpu.memory_space<vmem>>, vector<1x128xf32>
    %52 = vector.broadcast %51 : vector<1x128xf32> to vector<16x128xf32>
    %53 = arith.addf %50, %52 : vector<16x128xf32>
    %c0_56 = arith.constant 0 : index
    %c1_57 = arith.constant 1 : index
    %c0_58 = arith.constant 0 : index
    %54 = vector.load %arg1[%c0_56, %c1_57, %c0_58] : memref<1x18x128xbf16, #tpu.memory_space<vmem>>, vector<1x16x128xbf16>
    %55 = vector.shape_cast %54 : vector<1x16x128xbf16> to vector<16x128xbf16>
    %56 = arith.extf %55 : vector<16x128xbf16> to vector<16x128xf32>
    %57 = arith.addf %53, %56 : vector<16x128xf32>
    %cst_59 = arith.constant 0.000000e+00 : f32
    %58 = vector.broadcast %cst_59 : f32 to vector<16x128xf32>
    %59 = arith.maximumf %57, %58 : vector<16x128xf32>
    %60 = vector.shape_cast %59 : vector<16x128xf32> to vector<1x16x128xf32>
    %c0_60 = arith.constant 0 : index
    %c0_61 = arith.constant 0 : index
    %c0_62 = arith.constant 0 : index
    %61 = vector.load %arg8[%c0_60, %c0_61, %c0_62] : memref<1x16x128xf32, #tpu.memory_space<vmem>>, vector<1x16x128xf32>
    tpu.vector_store %arg8[%c0_60, %c0_61, %c0_62], %60 {strides = array<i32>} : memref<1x16x128xf32, #tpu.memory_space<vmem>>, vector<1x16x128xf32>,
    return
  }
  func.func @transform_0(%arg0: i32) -> (i32, i32, i32) {
    %c0_i32 = arith.constant 0 : i32
    %c0_i32_0 = arith.constant 0 : i32
    %c0_i32_1 = arith.constant 0 : i32
    return %arg0, %c0_i32, %c0_i32_0 : i32, i32, i32
  }
  func.func @transform_1(%arg0: i32) -> (i32, i32, i32) {
    %c0_i32 = arith.constant 0 : i32
    %c0_i32_0 = arith.constant 0 : i32
    %c0_i32_1 = arith.constant 0 : i32
    %c0_i32_2 = arith.constant 0 : i32
    return %c0_i32, %c0_i32_0, %c0_i32_1 : i32, i32, i32
  }
  func.func @transform_2(%arg0: i32) -> (i32, i32) {
    %c0_i32 = arith.constant 0 : i32
    %c0_i32_0 = arith.constant 0 : i32
    %c0_i32_1 = arith.constant 0 : i32
    return %c0_i32, %c0_i32_0 : i32, i32
  }
  func.func @transform_3(%arg0: i32) -> (i32, i32) {
    %c0_i32 = arith.constant 0 : i32
    %c0_i32_0 = arith.constant 0 : i32
    %c0_i32_1 = arith.constant 0 : i32
    return %c0_i32, %c0_i32_0 : i32, i32
  }
  func.func @transform_4(%arg0: i32) -> (i32, i32, i32) {
    %c0_i32 = arith.constant 0 : i32
    %c0_i32_0 = arith.constant 0 : i32
    %c0_i32_1 = arith.constant 0 : i32
    %c0_i32_2 = arith.constant 0 : i32
    return %c0_i32, %c0_i32_0, %c0_i32_1 : i32, i32, i32
  }
  func.func @transform_5(%arg0: i32) -> (i32, i32) {
    %c0_i32 = arith.constant 0 : i32
    %c0_i32_0 = arith.constant 0 : i32
    %c0_i32_1 = arith.constant 0 : i32
    return %c0_i32, %c0_i32_0 : i32, i32
  }
  func.func @transform_6(%arg0: i32) -> (i32, i32) {
    %c0_i32 = arith.constant 0 : i32
    %c0_i32_0 = arith.constant 0 : i32
    %c0_i32_1 = arith.constant 0 : i32
    return %c0_i32, %c0_i32_0 : i32, i32
  }
  func.func @transform_7(%arg0: i32) -> (i32, i32, i32) {
    %c0_i32 = arith.constant 0 : i32
    %c0_i32_0 = arith.constant 0 : i32
    %c0_i32_1 = arith.constant 0 : i32
    return %arg0, %c0_i32, %c0_i32_0 : i32, i32, i32
  }
}

</mosaic_0001>

<llo_original>
// kernel: tpu_custom_call.1
$region0: #{tpu_custom_call.1}
  #allocation0 [shape = 'u32[]', space=smem, size = 0x4, offset = 0x4, fixed_abs, tag = 'smem constant byte address 0x4 - core index']
  #allocation1 [shape = 'u32[144,128]{1,0:T(1,128)}', space=vmem, size = 0x12000, scoped, tag = 'internal scratch']
  #allocation2 [shape = 'bf16[1,18,128]{2,1,0:T(8,128)(2,1)}', space=vmem, size = 0x1800, scoped, tag = 'scratch operand']
  %s0 = inlined_call_operand.vmem [shape: bf16[2,18,128], index: 0, kind: input, shape index: {}]
  %s1 = inlined_call_operand.hbm [shape: bf16[3,128,128], index: 1, kind: input, shape index: {}]
  %s2 = inlined_call_operand.vmem [shape: f32[1,128], index: 2, kind: input, shape index: {}]
  %s3 = inlined_call_operand.vmem [shape: f32[1,128], index: 3, kind: input, shape index: {}]
  %s4 = inlined_call_operand.hbm [shape: bf16[3,128,128], index: 4, kind: input, shape index: {}]
  %s5 = inlined_call_operand.vmem [shape: f32[1,128], index: 5, kind: input, shape index: {}]
  %s6 = inlined_call_operand.vmem [shape: f32[1,128], index: 6, kind: input, shape index: {}]
  %s7 = inlined_call_operand.hbm [shape: f32[2,16,128], index: 7, kind: output, shape index: {}]
  %s8 = sld [smem:[#allocation0]]
  $region69: #{tpu_custom_call.1} parent=0
    _
  %s10 = ssub.s32 1, %s8
  %s11 = scalar_select 0, %s10, %s8
  $region1: #{tpu_custom_call.1} parent=0
    #allocation3 [shape = 'u8[98304]{0}', space=vmem, size = 0x18000, scoped, tag = 'input window, operand 1, single buffered']
    #allocation4 [shape = 's32[2]{0}', space=sflag, size = 0x8, scoped, tag = 'scoped memory for tpu_custom_call.1']
    #allocation5 [shape = 's32[2]{0}', space=sflag, size = 0x8, scoped, tag = 'scoped memory for tpu_custom_call.1']
    #allocation6 [shape = 'u8[98304]{0}', space=vmem, size = 0x18000, scoped, tag = 'input window, operand 4, single buffered']
    #allocation7 [shape = 's32[1]{0}', space=sflag, size = 0x4, scoped, tag = 'scoped memory for tpu_custom_call.1']
    #allocation8 [shape = 'u8[16384]{0}', space=vmem, size = 0x4000, scoped, tag = 'output window, operand 0']
    %12 = vsyncpa [#allocation4], 0
    %13 = vsyncpa [#allocation7], 0
    %14 = vsyncpa [#allocation5], 0
    %s15 = scalar_lea.sflag [#allocation5], 1
    %16 = vsyncpa %s15, 0
    loop: start=0, step=1, limit=4
    $region2: #{tpu_custom_call.1} parent=1 // loop_pre_header
      _
    $region3: #{tpu_custom_call.1} parent=1 // loop_header
      %s18 = sphi 0, %s22
      %p19 = scmp.ge.s32.totalorder %s18, 4
      %s28 = sphi 0, %s30
      %s31 = sphi 0, %s28
      %s32 = sphi 0, %s31
      %s48 = sphi 0, %s32
      %s52 = sphi 0, %s52
      %s54 = sphi 0, %s52
      %s55 = sphi 0, %s54
      %s69 = sphi 0, %s55
      %s73 = sphi 0, %s73
      %s75 = sphi 0, %s73
      %s76 = sphi 0, %s75
      %s90 = sphi 0, %s76
      %s94 = sphi 0, %s94
      %s96 = sphi 0, %s94
      %s97 = sphi 0, %s96
      %s111 = sphi 0, %s97
      %s115 = sphi 0, %s115
      %s117 = sphi 0, %s115
      %s118 = sphi 0, %s117
      %s132 = sphi 0, %s118
      %s136 = sphi 0, %s136
      %s138 = sphi 0, %s136
      %s139 = sphi 0, %s138
      %s153 = sphi 0, %s139
      %s157 = sphi 0, %s157
      %s159 = sphi 0, %s157
      %s160 = sphi 0, %s159
      %s174 = sphi 0, %s160
      %s180 = sphi 0, %s182
      %s183 = sphi 0, %s180
      %s184 = sphi 0, %s183
      %s200 = sphi 0, %s184
    $region4: #{tpu_custom_call.1} parent=1 // loop_header_branch
      %21 = sbr.rel (%p19) target = $region8
    $region5: #{tpu_custom_call.1} parent=1 // loop_body
      %s23 = ssub.s32 %s18, 1
      %s24 = ssub.s32 %s18, 2
      %s25 = sadd.s32 %s18, 1
      %s26 = ssub.s32 %s18, %s25
      %p27 = scmp.eq.s32.totalorder %s26, 0
      %s29 = sadd.s32 %s28, 1
      %s30 = scalar_select %p27, %s28, %s29
      %p33 = pneg %p27
      %p34 = scmp.eq.s32.totalorder %s18, 1
      %p35 = por %p33, %p34
      %p36 = scmp.ne.s32.totalorder %s28, %s31
      %p37 = scmp.eq.s32.totalorder %s18, 0
      %p38 = por %p36, %p37
      %p39 = scmp.ne.s32.totalorder %s28, %s31
      %p40 = scmp.eq.s32.totalorder %s23, 1
      %p41 = por %p39, %p40
      %p42 = scmp.ne.s32.totalorder %s31, %s32
      %p43 = scmp.eq.s32.totalorder %s23, 0
      %p44 = por %p42, %p43
      %p45 = scmp.ne.s32.totalorder %s31, %s32
      %p46 = scmp.eq.s32.totalorder %s24, 1
      %p47 = por %p45, %p46
      %p49 = scmp.ne.s32.totalorder %s32, %s48
      %p50 = scmp.eq.s32.totalorder %s24, 0
      %p51 = por %p49, %p50
      %s53 = sadd.s32 %s52, 1
      %p56 = scmp.eq.s32.totalorder %s18, 1
      %p57 = scmp.ne.s32.totalorder %s52, %s54
      %p58 = scmp.eq.s32.totalorder %s18, 0
      %p59 = por %p57, %p58
      %p60 = scmp.ne.s32.totalorder %s52, %s54
      %p61 = scmp.eq.s32.totalorder %s23, 1
      %p62 = por %p60, %p61
      %p63 = scmp.ne.s32.totalorder %s54, %s55
      %p64 = scmp.eq.s32.totalorder %s23, 0
      %p65 = por %p63, %p64
      %p66 = scmp.ne.s32.totalorder %s54, %s55
      %p67 = scmp.eq.s32.totalorder %s24, 1
      %p68 = por %p66, %p67
      %p70 = scmp.ne.s32.totalorder %s55, %s69
      %p71 = scmp.eq.s32.totalorder %s24, 0
      %p72 = por %p70, %p71
      %s74 = sadd.s32 %s73, 1
      %p77 = scmp.eq.s32.totalorder %s18, 1
      %p78 = scmp.ne.s32.totalorder %s73, %s75
      %p79 = scmp.eq.s32.totalorder %s18, 0
      %p80 = por %p78, %p79
      %p81 = scmp.ne.s32.totalorder %s73, %s75
      %p82 = scmp.eq.s32.totalorder %s23, 1
      %p83 = por %p81, %p82
      %p84 = scmp.ne.s32.totalorder %s75, %s76
      %p85 = scmp.eq.s32.totalorder %s23, 0
      %p86 = por %p84, %p85
      %p87 = scmp.ne.s32.totalorder %s75, %s76
      %p88 = scmp.eq.s32.totalorder %s24, 1
      %p89 = por %p87, %p88
      %p91 = scmp.ne.s32.totalorder %s76, %s90
      %p92 = scmp.eq.s32.totalorder %s24, 0
      %p93 = por %p91, %p92
      %s95 = sadd.s32 %s94, 1
      %p98 = scmp.eq.s32.totalorder %s18, 1
      %p99 = scmp.ne.s32.totalorder %s94, %s96
      %p100 = scmp.eq.s32.totalorder %s18, 0
      %p101 = por %p99, %p100
      %p102 = scmp.ne.s32.totalorder %s94, %s96
      %p103 = scmp.eq.s32.totalorder %s23, 1
      %p104 = por %p102, %p103
      %p105 = scmp.ne.s32.totalorder %s96, %s97
      %p106 = scmp.eq.s32.totalorder %s23, 0
      %p107 = por %p105, %p106
      %p108 = scmp.ne.s32.totalorder %s96, %s97
      %p109 = scmp.eq.s32.totalorder %s24, 1
      %p110 = por %p108, %p109
      %p112 = scmp.ne.s32.totalorder %s97, %s111
      %p113 = scmp.eq.s32.totalorder %s24, 0
      %p114 = por %p112, %p113
      %s116 = sadd.s32 %s115, 1
      %p119 = scmp.eq.s32.totalorder %s18, 1
      %p120 = scmp.ne.s32.totalorder %s115, %s117
      %p121 = scmp.eq.s32.totalorder %s18, 0
      %p122 = por %p120, %p121
      %p123 = scmp.ne.s32.totalorder %s115, %s117
      %p124 = scmp.eq.s32.totalorder %s23, 1
      %p125 = por %p123, %p124
      %p126 = scmp.ne.s32.totalorder %s117, %s118
      %p127 = scmp.eq.s32.totalorder %s23, 0
      %p128 = por %p126, %p127
      %p129 = scmp.ne.s32.totalorder %s117, %s118
      %p130 = scmp.eq.s32.totalorder %s24, 1
      %p131 = por %p129, %p130
      %p133 = scmp.ne.s32.totalorder %s118, %s132
      %p134 = scmp.eq.s32.totalorder %s24, 0
      %p135 = por %p133, %p134
      %s137 = sadd.s32 %s136, 1
      %p140 = scmp.eq.s32.totalorder %s18, 1
      %p141 = scmp.ne.s32.totalorder %s136, %s138
      %p142 = scmp.eq.s32.totalorder %s18, 0
      %p143 = por %p141, %p142
      %p144 = scmp.ne.s32.totalorder %s136, %s138
      %p145 = scmp.eq.s32.totalorder %s23, 1
      %p146 = por %p144, %p145
      %p147 = scmp.ne.s32.totalorder %s138, %s139
      %p148 = scmp.eq.s32.totalorder %s23, 0
      %p149 = por %p147, %p148
      %p150 = scmp.ne.s32.totalorder %s138, %s139
      %p151 = scmp.eq.s32.totalorder %s24, 1
      %p152 = por %p150, %p151
      %p154 = scmp.ne.s32.totalorder %s139, %s153
      %p155 = scmp.eq.s32.totalorder %s24, 0
      %p156 = por %p154, %p155
      %s158 = sadd.s32 %s157, 1
      %p161 = scmp.eq.s32.totalorder %s18, 1
      %p162 = scmp.ne.s32.totalorder %s157, %s159
      %p163 = scmp.eq.s32.totalorder %s18, 0
      %p164 = por %p162, %p163
      %p165 = scmp.ne.s32.totalorder %s157, %s159
      %p166 = scmp.eq.s32.totalorder %s23, 1
      %p167 = por %p165, %p166
      %p168 = scmp.ne.s32.totalorder %s159, %s160
      %p169 = scmp.eq.s32.totalorder %s23, 0
      %p170 = por %p168, %p169
      %p171 = scmp.ne.s32.totalorder %s159, %s160
      %p172 = scmp.eq.s32.totalorder %s24, 1
      %p173 = por %p171, %p172
      %p175 = scmp.ne.s32.totalorder %s160, %s174
      %p176 = scmp.eq.s32.totalorder %s24, 0
      %p177 = por %p175, %p176
      %s178 = ssub.s32 %s18, %s25
      %p179 = scmp.eq.s32.totalorder %s178, 0
      %s181 = sadd.s32 %s180, 1
      %s182 = scalar_select %p179, %s180, %s181
      %p185 = pneg %p179
      %p186 = scmp.eq.s32.totalorder %s18, 1
      %p187 = por %p185, %p186
      %p188 = scmp.ne.s32.totalorder %s180, %s183
      %p189 = scmp.eq.s32.totalorder %s18, 0
      %p190 = por %p188, %p189
      %p191 = scmp.ne.s32.totalorder %s180, %s183
      %p192 = scmp.eq.s32.totalorder %s23, 1
      %p193 = por %p191, %p192
      %p194 = scmp.ne.s32.totalorder %s183, %s184
      %p195 = scmp.eq.s32.totalorder %s23, 0
      %p196 = por %p194, %p195
      %p197 = scmp.ne.s32.totalorder %s183, %s184
      %p198 = scmp.eq.s32.totalorder %s24, 1
      %p199 = por %p197, %p198
      %p201 = scmp.ne.s32.totalorder %s184, %s200
      %p202 = scmp.eq.s32.totalorder %s24, 0
      %p203 = por %p201, %p202
      %p204 = scmp.le.s32.totalorder 1, %s18
      %p205 = scmp.lt.s32.totalorder %s18, 3
      %p206 = pnand %p204, %p205
      %p207 = pneg %p206
      // Predicated region
      $region9: #{tpu_custom_call.1} parent=5 // pred_check
        _
      $region10: #{tpu_custom_call.1} parent=5 // pred_check_branch
        %209 = sbr.rel (%p206) target = $region12
      $region11: #{tpu_custom_call.1} parent=5 // pred_region
        %s210 = ssub.s32 %s18, 1
        // Predicated region
        $region13: #{tpu_custom_call.1} parent=11 // pred_check
          %p211 = pneg %p65
        $region14: #{tpu_custom_call.1} parent=11 // pred_check_branch
          %213 = sbr.rel (%p211) target = $region16
        $region15: #{tpu_custom_call.1} parent=11 // pred_region
          %s215 = ssub.s32 3072, 3072
          %216 = vsyncadd [#allocation4], %s215
          %s217 = sshll.u32 [#allocation3], 4
          %s218 = int_to_ptr.vmem [resolvable:$true] %s217
          %223 = dma.hbm_to_vmem [thread:$0]  %s1, 3072, %s218, [#allocation4], 64, 64, 4
        $region16: #{tpu_custom_call.1} parent=11 // pred_fallthru
          _
        // Predicated region
        $region17: #{tpu_custom_call.1} parent=11 // pred_check
          %p224 = pneg %p86
        $region18: #{tpu_custom_call.1} parent=11 // pred_check_branch
          %226 = sbr.rel (%p224) target = $region20
        $region19: #{tpu_custom_call.1} parent=11 // pred_region
          _
        $region20: #{tpu_custom_call.1} parent=11 // pred_fallthru
          _
        // Predicated region
        $region21: #{tpu_custom_call.1} parent=11 // pred_check
          %p227 = pneg %p107
        $region22: #{tpu_custom_call.1} parent=11 // pred_check_branch
          %229 = sbr.rel (%p227) target = $region24
        $region23: #{tpu_custom_call.1} parent=11 // pred_region
          _
        $region24: #{tpu_custom_call.1} parent=11 // pred_fallthru
          _
        // Predicated region
        $region25: #{tpu_custom_call.1} parent=11 // pred_check
          %p230 = pneg %p128
        $region26: #{tpu_custom_call.1} parent=11 // pred_check_branch
          %232 = sbr.rel (%p230) target = $region28
        $region27: #{tpu_custom_call.1} parent=11 // pred_region
          %s234 = ssub.s32 3072, 3072
          %235 = vsyncadd [#allocation7], %s234
          %s236 = sshll.u32 [#allocation6], 4
          %s237 = int_to_ptr.vmem [resolvable:$true] %s236
          %242 = dma.hbm_to_vmem [thread:$0]  %s4, 3072, %s237, [#allocation7], 64, 64, 4
        $region28: #{tpu_custom_call.1} parent=11 // pred_fallthru
          _
        // Predicated region
        $region29: #{tpu_custom_call.1} parent=11 // pred_check
          %p243 = pneg %p149
        $region30: #{tpu_custom_call.1} parent=11 // pred_check_branch
          %245 = sbr.rel (%p243) target = $region32
        $region31: #{tpu_custom_call.1} parent=11 // pred_region
          _
        $region32: #{tpu_custom_call.1} parent=11 // pred_fallthru
          _
        // Predicated region
        $region33: #{tpu_custom_call.1} parent=11 // pred_check
          %p246 = pneg %p170
        $region34: #{tpu_custom_call.1} parent=11 // pred_check_branch
          %248 = sbr.rel (%p246) target = $region36
        $region35: #{tpu_custom_call.1} parent=11 // pred_region
          _
        $region36: #{tpu_custom_call.1} parent=11 // pred_fallthru
          _
      $region12: #{tpu_custom_call.1} parent=5 // pred_fallthru
        _
      %p249 = scmp.lt.s32.totalorder %s18, 2
      // Predicated region
      $region37: #{tpu_custom_call.1} parent=5 // pred_check
        %p250 = pneg %p249
      $region38: #{tpu_custom_call.1} parent=5 // pred_check_branch
        %252 = sbr.rel (%p250) target = $region40
      $region39: #{tpu_custom_call.1} parent=5 // pred_region
        // Predicated region
        $region41: #{tpu_custom_call.1} parent=39 // pred_check
          %p253 = pneg %p38
        $region42: #{tpu_custom_call.1} parent=39 // pred_check_branch
          %255 = sbr.rel (%p253) target = $region44
        $region43: #{tpu_custom_call.1} parent=39 // pred_region
          %p256 = scmp.lt.s32.totalorder %s18, 1
          %s257 = scalar_select %p256, %s18, 1
          %s258 = smul.addr %s257, 3
          %s259 = smul.addr %s258, 4
          %s260 = scalar_lea.vmem %s0, %s259
        $region44: #{tpu_custom_call.1} parent=39 // pred_fallthru
          _
      $region40: #{tpu_custom_call.1} parent=5 // pred_fallthru
        _
      %p261 = scmp.le.s32.totalorder 1, %s18
      %p262 = scmp.lt.s32.totalorder %s18, 3
      %p263 = pnand %p261, %p262
      %p264 = pneg %p263
      // Predicated region
      $region45: #{tpu_custom_call.1} parent=5 // pred_check
        _
      $region46: #{tpu_custom_call.1} parent=5 // pred_check_branch
        %266 = sbr.rel (%p263) target = $region48
      $region47: #{tpu_custom_call.1} parent=5 // pred_region
        %s267 = ssub.s32 %s18, 1
        // Predicated region
        $region49: #{tpu_custom_call.1} parent=47 // pred_check
          %p268 = pneg %p65
        $region50: #{tpu_custom_call.1} parent=47 // pred_check_branch
          %270 = sbr.rel (%p268) target = $region52
        $region51: #{tpu_custom_call.1} parent=47 // pred_region
          %271 = dma.done [#allocation4], 3072
        $region52: #{tpu_custom_call.1} parent=47 // pred_fallthru
          _
        // Predicated region
        $region53: #{tpu_custom_call.1} parent=47 // pred_check
          %p272 = pneg %p128
        $region54: #{tpu_custom_call.1} parent=47 // pred_check_branch
          %274 = sbr.rel (%p272) target = $region56
        $region55: #{tpu_custom_call.1} parent=47 // pred_region
          %275 = dma.done [#allocation7], 3072
        $region56: #{tpu_custom_call.1} parent=47 // pred_fallthru
          _
        %p276 = scmp.lt.s32.totalorder %s23, 1
        %s277 = scalar_select %p276, %s23, 1
        %s278 = smul.addr %s277, 3
        %s279 = smul.addr %s278, 4
        %s280 = scalar_lea.vmem %s0, %s279
        %p281 = pneg %p44
        %p282 = pneg %p41
        %p283 = pneg %p65
        %p284 = pneg %p62
        %p285 = pneg %p86
        %p286 = pneg %p83
        %p287 = pneg %p107
        %p288 = pneg %p104
        %p289 = pneg %p128
        %p290 = pneg %p125
        %p291 = pneg %p149
        %p292 = pneg %p146
        %p293 = pneg %p170
        %p294 = pneg %p167
        %p295 = pneg %p196
        %p296 = pneg %p193
        %s297 = sand.u32 %s183, 1
        %s298 = scalar_lea.sflag [#allocation5], %s297
        %s299 = sand.u32 %s183, 1
        %s300 = smul.addr %s299, 16
        %s301 = scalar_lea.vmem [#allocation8], %s300
        %p302 = scmp.lt.s32.totalorder %s23, 1
        %s303 = scalar_select %p302, %s23, 1
        %s304 = smul.addr %s303, 3
        %s305 = smul.addr %s304, 4
        %s306 = scalar_lea.vmem %s0, %s305
        %vm308 = vcmask 1040384
        %vm309 = vsmask.f32 256
        %vm310 = vmand %vm308, %vm309
        %v311 = vld [vmem:[#allocation2] sm:$0x1]
        %v312 = vsel %vm310, 0, %v311
        %313 = vst [vmem:[#allocation2] sm:$0x1] %v312
        %vm314 = vsmask.f32 7938
        %vm315 = vmand %vm308, %vm314
        %v316 = vld [vmem:[#allocation2 + $0x8] sm:$0x1]
        %v317 = vsel %vm315, 0, %v316
        %318 = vst [vmem:[#allocation2 + $0x8] sm:$0x1] %v317
        %v319 = vld [vmem:[%s306] sm:$0xf]
        %v320 = vld [vmem:[%s306 + $0x4] sm:$0xf]
        %v321 = vld [vmem:[#allocation3] sm:$0xf]
        %v322 = vld [vmem:[#allocation3 + $0x4] sm:$0xf]
        %v323 = vld [vmem:[#allocation3 + $0x8] sm:$0xf]
        %v324 = vld [vmem:[#allocation3 + $0xc] sm:$0xf]
        %v325 = vld [vmem:[#allocation3 + $0x10] sm:$0xf]
        %v326 = vld [vmem:[#allocation3 + $0x14] sm:$0xf]
        %v327 = vld [vmem:[#allocation3 + $0x18] sm:$0xf]
        %v328 = vld [vmem:[#allocation3 + $0x1c] sm:$0xf]
        %v329 = vld [vmem:[#allocation3 + $0x20] sm:$0xf]
        %v330 = vld [vmem:[#allocation3 + $0x24] sm:$0xf]
        %v331 = vld [vmem:[#allocation3 + $0x28] sm:$0xf]
        %v332 = vld [vmem:[#allocation3 + $0x2c] sm:$0xf]
        %v333 = vld [vmem:[#allocation3 + $0x30] sm:$0xf]
        %v334 = vld [vmem:[#allocation3 + $0x34] sm:$0xf]
        %v335 = vld [vmem:[#allocation3 + $0x38] sm:$0xf]
        %v336 = vld [vmem:[#allocation3 + $0x3c] sm:$0xf]
        %v337 = vld [vmem:[%s306 + $0x8] sm:$0x1]
        %s338 = scalar_lea.vmem [#allocation3], 64
        %v339 = vld [vmem:[%s338] sm:$0xf]
        %v340 = vld [vmem:[%s338 + $0x4] sm:$0xf]
        %v341 = vld [vmem:[%s338 + $0x8] sm:$0xf]
        %v342 = vld [vmem:[%s338 + $0xc] sm:$0xf]
        %v343 = vld [vmem:[%s338 + $0x10] sm:$0xf]
        %v344 = vld [vmem:[%s338 + $0x14] sm:$0xf]
        %v345 = vld [vmem:[%s338 + $0x18] sm:$0xf]
        %v346 = vld [vmem:[%s338 + $0x1c] sm:$0xf]
        %v347 = vld [vmem:[%s338 + $0x20] sm:$0xf]
        %v348 = vld [vmem:[%s338 + $0x24] sm:$0xf]
        %v349 = vld [vmem:[%s338 + $0x28] sm:$0xf]
        %v350 = vld [vmem:[%s338 + $0x2c] sm:$0xf]
        %v351 = vld [vmem:[%s338 + $0x30] sm:$0xf]
        %v352 = vld [vmem:[%s338 + $0x34] sm:$0xf]
        %v353 = vld [vmem:[%s338 + $0x38] sm:$0xf]
        %v354 = vld [vmem:[%s338 + $0x3c] sm:$0xf]
        %v358 = vunpack.c.l.b16 %v319
        %v359 = vunpack.c.l.b16 %v320
        %v360 = vunpack.c.l.b16 %v337
        %v361 = vpack.c.b16 %v359, %v358
        %v362 = vpack.c.b16 %v360, %v360
        %vm363 = vsmask.f32 7424
        %v365 = vshrl.u32 %v361, 16
        %v367 = vshll.u32 %v361, 16
        %v369 = vrot.slane %v367, 1
        %v370 = vor.u32 %v365, %v369
        %v372 = vshll.u32 %v362, 16
        %v374 = vrot.slane %v372, 1
        %v375 = vsel %vm363, %v370, %v374
        %v393 = vunpack.c.l.b16 %v339
        %v394 = vunpack.c.l.b16 %v340
        %v395 = vunpack.c.l.b16 %v341
        %v396 = vunpack.c.l.b16 %v342
        %v397 = vunpack.c.l.b16 %v343
        %v398 = vunpack.c.l.b16 %v344
        %v399 = vunpack.c.l.b16 %v345
        %v400 = vunpack.c.l.b16 %v346
        %v401 = vunpack.c.l.b16 %v347
        %v402 = vunpack.c.l.b16 %v348
        %v403 = vunpack.c.l.b16 %v349
        %v404 = vunpack.c.l.b16 %v350
        %v405 = vunpack.c.l.b16 %v351
        %v406 = vunpack.c.l.b16 %v352
        %v407 = vunpack.c.l.b16 %v353
        %v408 = vunpack.c.l.b16 %v354
        %v409 = vpack.c.b16 %v394, %v393
        %v410 = vpack.c.b16 %v396, %v395
        %v411 = vpack.c.b16 %v398, %v397
        %v412 = vpack.c.b16 %v400, %v399
        %v413 = vpack.c.b16 %v402, %v401
        %v414 = vpack.c.b16 %v404, %v403
        %v415 = vpack.c.b16 %v406, %v405
        %v416 = vpack.c.b16 %v408, %v407
        %425 = vmatprep.subr.bf16.mxu0 0
        %426 = vmatpush1.bf16.msra.mxu0 %v409
        %427 = vmatprep.subr.bf16.mxu0 0
        %428 = vmatpush1.bf16.msra.mxu0 %v410
        %429 = vmatprep.subr.bf16.mxu0 0
        %430 = vmatpush1.bf16.msra.mxu0 %v411
        %431 = vmatprep.subr.bf16.mxu0 0
        %432 = vmatpush1.bf16.msra.mxu0 %v412
        %433 = vmatprep.subr.bf16.mxu0 0
        %434 = vmatpush1.bf16.msra.mxu0 %v413
        %435 = vmatprep.subr.bf16.mxu0 0
        %436 = vmatpush1.bf16.msra.mxu0 %v414
        %437 = vmatprep.subr.bf16.mxu0 0
        %438 = vmatpush1.bf16.msra.mxu0 %v415
        %439 = vmatprep.subr.bf16.mxu0 0
        %440 = vmatpush1.bf16.msra.mxu0 %v416
        %441 = vmatprep.subr.bf16.mxu0 0
        %442 = vmatpush1.bf16.msra.mxu0 0
        %443 = vmatprep.subr.bf16.mxu0 0
        %444 = vmatpush1.bf16.msra.mxu0 0
        %445 = vmatprep.subr.bf16.mxu0 0
        %446 = vmatpush1.bf16.msra.mxu0 0
        %447 = vmatprep.subr.bf16.mxu0 0
        %448 = vmatpush1.bf16.msra.mxu0 0
        %449 = vmatprep.subr.bf16.mxu0 0
        %450 = vmatpush1.bf16.msra.mxu0 0
        %451 = vmatprep.subr.bf16.mxu0 0
        %452 = vmatpush1.bf16.msra.mxu0 0
        %453 = vmatprep.subr.bf16.mxu0 0
        %454 = vmatpush1.bf16.msra.mxu0 0
        %455 = vmatprep.subr.bf16.mxu0 0
        %456 = vmatpush1.bf16.msra.mxu0 0
        %457 = vmatprep.mubr.bf16.mxu0 0
        %458 = vmatmul.mubr.bf16.gmra.mrb[0].mxu0 %v375
        %v459 = vpop.f32.mrb[0].mxu0
        %v460 = vadd.f32 0.0, %v459
        %v461 = vpop.f32.mrb[0].mxu0
        %v462 = vpop.f32.mrb[0].mxu0
        %v463 = vadd.f32 0.0, %v462
        %v464 = vpop.f32.mrb[0].mxu0
        %465 = vdwg.mxu0
        %v483 = vunpack.c.l.b16 %v321
        %v484 = vunpack.c.l.b16 %v322
        %v485 = vunpack.c.l.b16 %v323
        %v486 = vunpack.c.l.b16 %v324
        %v487 = vunpack.c.l.b16 %v325
        %v488 = vunpack.c.l.b16 %v326
        %v489 = vunpack.c.l.b16 %v327
        %v490 = vunpack.c.l.b16 %v328
        %v491 = vunpack.c.l.b16 %v329
        %v492 = vunpack.c.l.b16 %v330
        %v493 = vunpack.c.l.b16 %v331
        %v494 = vunpack.c.l.b16 %v332
        %v495 = vunpack.c.l.b16 %v333
        %v496 = vunpack.c.l.b16 %v334
        %v497 = vunpack.c.l.b16 %v335
        %v498 = vunpack.c.l.b16 %v336
        %v499 = vpack.c.b16 %v484, %v483
        %v500 = vpack.c.b16 %v486, %v485
        %v501 = vpack.c.b16 %v488, %v487
        %v502 = vpack.c.b16 %v490, %v489
        %v503 = vpack.c.b16 %v492, %v491
        %v504 = vpack.c.b16 %v494, %v493
        %v505 = vpack.c.b16 %v496, %v495
        %v506 = vpack.c.b16 %v498, %v497
        %515 = vmatprep.subr.bf16.mxu0 0
        %516 = vmatpush1.bf16.msra.mxu0 %v499
        %517 = vmatprep.subr.bf16.mxu0 0
        %518 = vmatpush1.bf16.msra.mxu0 %v500
        %519 = vmatprep.subr.bf16.mxu0 0
        %520 = vmatpush1.bf16.msra.mxu0 %v501
        %521 = vmatprep.subr.bf16.mxu0 0
        %522 = vmatpush1.bf16.msra.mxu0 %v502
        %523 = vmatprep.subr.bf16.mxu0 0
        %524 = vmatpush1.bf16.msra.mxu0 %v503
        %525 = vmatprep.subr.bf16.mxu0 0
        %526 = vmatpush1.bf16.msra.mxu0 %v504
        %527 = vmatprep.subr.bf16.mxu0 0
        %528 = vmatpush1.bf16.msra.mxu0 %v505
        %529 = vmatprep.subr.bf16.mxu0 0
        %530 = vmatpush1.bf16.msra.mxu0 %v506
        %531 = vmatprep.subr.bf16.mxu0 0
        %532 = vmatpush1.bf16.msra.mxu0 0
        %533 = vmatprep.subr.bf16.mxu0 0
        %534 = vmatpush1.bf16.msra.mxu0 0
        %535 = vmatprep.subr.bf16.mxu0 0
        %536 = vmatpush1.bf16.msra.mxu0 0
        %537 = vmatprep.subr.bf16.mxu0 0
        %538 = vmatpush1.bf16.msra.mxu0 0
        %539 = vmatprep.subr.bf16.mxu0 0
        %540 = vmatpush1.bf16.msra.mxu0 0
        %541 = vmatprep.subr.bf16.mxu0 0
        %542 = vmatpush1.bf16.msra.mxu0 0
        %543 = vmatprep.subr.bf16.mxu0 0
        %544 = vmatpush1.bf16.msra.mxu0 0
        %545 = vmatprep.subr.bf16.mxu0 0
        %546 = vmatpush1.bf16.msra.mxu0 0
        %547 = vmatprep.mubr.bf16.mxu0 0
        %548 = vmatmul.mubr.bf16.gmra.mrb[0].mxu0 %v361
        %v549 = vpop.f32.mrb[0].mxu0
        %v550 = vadd.f32 %v460, %v549
        %v551 = vpop.f32.mrb[0].mxu0
        %v552 = vpop.f32.mrb[0].mxu0
        %v553 = vadd.f32 %v463, %v552
        %v554 = vpop.f32.mrb[0].mxu0
        %555 = vdwg.mxu0
        %v556 = vld [vmem:[%s306] sm:$0xe]
        %s557 = scalar_lea.vmem [#allocation3], 128
        %v558 = vld [vmem:[%s557] sm:$0xf]
        %v559 = vld [vmem:[%s557 + $0x4] sm:$0xf]
        %v560 = vld [vmem:[%s557 + $0x8] sm:$0xf]
        %v561 = vld [vmem:[%s557 + $0xc] sm:$0xf]
        %v562 = vld [vmem:[%s557 + $0x10] sm:$0xf]
        %v563 = vld [vmem:[%s557 + $0x14] sm:$0xf]
        %v564 = vld [vmem:[%s557 + $0x18] sm:$0xf]
        %v565 = vld [vmem:[%s557 + $0x1c] sm:$0xf]
        %v566 = vld [vmem:[%s557 + $0x20] sm:$0xf]
        %v567 = vld [vmem:[%s557 + $0x24] sm:$0xf]
        %v568 = vld [vmem:[%s557 + $0x28] sm:$0xf]
        %v569 = vld [vmem:[%s557 + $0x2c] sm:$0xf]
        %v570 = vld [vmem:[%s557 + $0x30] sm:$0xf]
        %v571 = vld [vmem:[%s557 + $0x34] sm:$0xf]
        %v572 = vld [vmem:[%s557 + $0x38] sm:$0xf]
        %v573 = vld [vmem:[%s557 + $0x3c] sm:$0xf]
        %v575 = vunpack.c.l.b16 %v556
        %v576 = vpack.c.b16 %v359, %v575
        %vm577 = vcmask 1046528
        %v578 = vrot.slane %v576, 1
        %v579 = vrot.slane %v362, 1
        %v580 = vsel %vm577, %v578, %v579
        %v598 = vunpack.c.l.b16 %v558
        %v599 = vunpack.c.l.b16 %v559
        %v600 = vunpack.c.l.b16 %v560
        %v601 = vunpack.c.l.b16 %v561
        %v602 = vunpack.c.l.b16 %v562
        %v603 = vunpack.c.l.b16 %v563
        %v604 = vunpack.c.l.b16 %v564
        %v605 = vunpack.c.l.b16 %v565
        %v606 = vunpack.c.l.b16 %v566
        %v607 = vunpack.c.l.b16 %v567
        %v608 = vunpack.c.l.b16 %v568
        %v609 = vunpack.c.l.b16 %v569
        %v610 = vunpack.c.l.b16 %v570
        %v611 = vunpack.c.l.b16 %v571
        %v612 = vunpack.c.l.b16 %v572
        %v613 = vunpack.c.l.b16 %v573
        %v614 = vpack.c.b16 %v599, %v598
        %v615 = vpack.c.b16 %v601, %v600
        %v616 = vpack.c.b16 %v603, %v602
        %v617 = vpack.c.b16 %v605, %v604
        %v618 = vpack.c.b16 %v607, %v606
        %v619 = vpack.c.b16 %v609, %v608
        %v620 = vpack.c.b16 %v611, %v610
        %v621 = vpack.c.b16 %v613, %v612
        %630 = vmatprep.subr.bf16.mxu0 0
        %631 = vmatpush1.bf16.msra.mxu0 %v614
        %632 = vmatprep.subr.bf16.mxu0 0
        %633 = vmatpush1.bf16.msra.mxu0 %v615
        %634 = vmatprep.subr.bf16.mxu0 0
        %635 = vmatpush1.bf16.msra.mxu0 %v616
        %636 = vmatprep.subr.bf16.mxu0 0
        %637 = vmatpush1.bf16.msra.mxu0 %v617
        %638 = vmatprep.subr.bf16.mxu0 0
        %639 = vmatpush1.bf16.msra.mxu0 %v618
        %640 = vmatprep.subr.bf16.mxu0 0
        %641 = vmatpush1.bf16.msra.mxu0 %v619
        %642 = vmatprep.subr.bf16.mxu0 0
        %643 = vmatpush1.bf16.msra.mxu0 %v620
        %644 = vmatprep.subr.bf16.mxu0 0
        %645 = vmatpush1.bf16.msra.mxu0 %v621
        %646 = vmatprep.subr.bf16.mxu0 0
        %647 = vmatpush1.bf16.msra.mxu0 0
        %648 = vmatprep.subr.bf16.mxu0 0
        %649 = vmatpush1.bf16.msra.mxu0 0
        %650 = vmatprep.subr.bf16.mxu0 0
        %651 = vmatpush1.bf16.msra.mxu0 0
        %652 = vmatprep.subr.bf16.mxu0 0
        %653 = vmatpush1.bf16.msra.mxu0 0
        %654 = vmatprep.subr.bf16.mxu0 0
        %655 = vmatpush1.bf16.msra.mxu0 0
        %656 = vmatprep.subr.bf16.mxu0 0
        %657 = vmatpush1.bf16.msra.mxu0 0
        %658 = vmatprep.subr.bf16.mxu0 0
        %659 = vmatpush1.bf16.msra.mxu0 0
        %660 = vmatprep.subr.bf16.mxu0 0
        %661 = vmatpush1.bf16.msra.mxu0 0
        %662 = vmatprep.mubr.bf16.mxu0 0
        %663 = vmatmul.mubr.bf16.gmra.mrb[0].mxu0 %v580
        %v664 = vpop.f32.mrb[0].mxu0
        %v665 = vadd.f32 0.0, %v664
        %v666 = vpop.f32.mrb[0].mxu0
        %v667 = vpop.f32.mrb[0].mxu0
        %v668 = vadd.f32 0.0, %v667
        %v669 = vpop.f32.mrb[0].mxu0
        %670 = vdwg.mxu0
        %v671 = vadd.f32 %v550, %v665
        %v672 = vadd.f32 %v553, %v668
        %v673 = vld [vmem:[%s2] sm:$0x1]
        %v675 = vlaneseq
        %v676 = vshrl.u32 %v675, 7
        %v677 = vsub.s32 0, %v676
        %v678 = vrot.slane %v673, %v677
        %v680 = vmul.f32 %v671, %v678
        %v681 = vmul.f32 %v672, %v678
        %v682 = vld [vmem:[%s3] sm:$0x1]
        %v684 = vlaneseq
        %v685 = vshrl.u32 %v684, 7
        %v686 = vsub.s32 0, %v685
        %v687 = vrot.slane %v682, %v686
        %v689 = vadd.f32 %v680, %v687
        %v690 = vadd.f32 %v681, %v687
        %v691 = vmax.f32 %v689, 0.0
        %v692 = vmax.f32 %v690, 0.0
        %v693 = vpack.c.bf16 %v692, %v691
        %v695 = vunpack.c.l.b16 %v693
        %v696 = vunpack.c.h.b16 %v693
        %v697 = vpack.c.b16 %v695, %v695
        %v698 = vpack.c.b16 %v696, %v696
        %vm699 = vsmask.f32 4368
        %vm700 = vmor %vm309, %vm699
        %v702 = vshrl.u32 %v697, 16
        %v704 = vrot.slane %v702, 7
        %v705 = vshll.u32 %v697, 16
        %v707 = vor.u32 %v704, %v705
        %v708 = vrot.slane %v704, 4
        %v710 = vshrl.u32 %v698, 16
        %v712 = vrot.slane %v710, 7
        %v713 = vshll.u32 %v698, 16
        %v715 = vor.u32 %v712, %v713
        %v716 = vsel %vm700, %v708, %v715
        %v717 = vrot.slane %v712, 4
        %vm721 = vcmask 1043456
        %vm722 = vmand %vm721, %vm314
        %v723 = vld [vmem:[#allocation2] sm:$0xf]
        %v724 = vsel %vm722, %v707, %v723
        %725 = vst [vmem:[#allocation2] sm:$0xf] %v724
        %726 = vst [vmem:[#allocation2 + $0x4] sm:$0xf] %v716
        %v727 = vld [vmem:[#allocation2 + $0x8] sm:$0x1]
        %v728 = vsel %vm310, %v717, %v727
        %729 = vst [vmem:[#allocation2 + $0x8] sm:$0x1] %v728
        %v730 = vld [vmem:[#allocation2] sm:$0xf]
        %v731 = vld [vmem:[#allocation2 + $0x4] sm:$0xf]
        %v732 = vld [vmem:[#allocation6] sm:$0xf]
        %v733 = vld [vmem:[#allocation6 + $0x4] sm:$0xf]
        %v734 = vld [vmem:[#allocation6 + $0x8] sm:$0xf]
        %v735 = vld [vmem:[#allocation6 + $0xc] sm:$0xf]
        %v736 = vld [vmem:[#allocation6 + $0x10] sm:$0xf]
        %v737 = vld [vmem:[#allocation6 + $0x14] sm:$0xf]
        %v738 = vld [vmem:[#allocation6 + $0x18] sm:$0xf]
        %v739 = vld [vmem:[#allocation6 + $0x1c] sm:$0xf]
        %v740 = vld [vmem:[#allocation6 + $0x20] sm:$0xf]
        %v741 = vld [vmem:[#allocation6 + $0x24] sm:$0xf]
        %v742 = vld [vmem:[#allocation6 + $0x28] sm:$0xf]
        %v743 = vld [vmem:[#allocation6 + $0x2c] sm:$0xf]
        %v744 = vld [vmem:[#allocation6 + $0x30] sm:$0xf]
        %v745 = vld [vmem:[#allocation6 + $0x34] sm:$0xf]
        %v746 = vld [vmem:[#allocation6 + $0x38] sm:$0xf]
        %v747 = vld [vmem:[#allocation6 + $0x3c] sm:$0xf]
        %v748 = vld [vmem:[#allocation2 + $0x8] sm:$0x1]
        %s749 = scalar_lea.vmem [#allocation6], 64
        %v750 = vld [vmem:[%s749] sm:$0xf]
        %v751 = vld [vmem:[%s749 + $0x4] sm:$0xf]
        %v752 = vld [vmem:[%s749 + $0x8] sm:$0xf]
        %v753 = vld [vmem:[%s749 + $0xc] sm:$0xf]
        %v754 = vld [vmem:[%s749 + $0x10] sm:$0xf]
        %v755 = vld [vmem:[%s749 + $0x14] sm:$0xf]
        %v756 = vld [vmem:[%s749 + $0x18] sm:$0xf]
        %v757 = vld [vmem:[%s749 + $0x1c] sm:$0xf]
        %v758 = vld [vmem:[%s749 + $0x20] sm:$0xf]
        %v759 = vld [vmem:[%s749 + $0x24] sm:$0xf]
        %v760 = vld [vmem:[%s749 + $0x28] sm:$0xf]
        %v761 = vld [vmem:[%s749 + $0x2c] sm:$0xf]
        %v762 = vld [vmem:[%s749 + $0x30] sm:$0xf]
        %v763 = vld [vmem:[%s749 + $0x34] sm:$0xf]
        %v764 = vld [vmem:[%s749 + $0x38] sm:$0xf]
        %v765 = vld [vmem:[%s749 + $0x3c] sm:$0xf]
        %v769 = vunpack.c.l.b16 %v730
        %v770 = vunpack.c.l.b16 %v731
        %v771 = vunpack.c.l.b16 %v748
        %v772 = vpack.c.b16 %v770, %v769
        %v773 = vpack.c.b16 %v771, %v771
        %v775 = vshrl.u32 %v772, 16
        %v777 = vshll.u32 %v772, 16
        %v779 = vrot.slane %v777, 1
        %v780 = vor.u32 %v775, %v779
        %v782 = vshll.u32 %v773, 16
        %v784 = vrot.slane %v782, 1
        %v785 = vsel %vm363, %v780, %v784
        %v803 = vunpack.c.l.b16 %v750
        %v804 = vunpack.c.l.b16 %v751
        %v805 = vunpack.c.l.b16 %v752
        %v806 = vunpack.c.l.b16 %v753
        %v807 = vunpack.c.l.b16 %v754
        %v808 = vunpack.c.l.b16 %v755
        %v809 = vunpack.c.l.b16 %v756
        %v810 = vunpack.c.l.b16 %v757
        %v811 = vunpack.c.l.b16 %v758
        %v812 = vunpack.c.l.b16 %v759
        %v813 = vunpack.c.l.b16 %v760
        %v814 = vunpack.c.l.b16 %v761
        %v815 = vunpack.c.l.b16 %v762
        %v816 = vunpack.c.l.b16 %v763
        %v817 = vunpack.c.l.b16 %v764
        %v818 = vunpack.c.l.b16 %v765
        %v819 = vpack.c.b16 %v804, %v803
        %v820 = vpack.c.b16 %v806, %v805
        %v821 = vpack.c.b16 %v808, %v807
        %v822 = vpack.c.b16 %v810, %v809
        %v823 = vpack.c.b16 %v812, %v811
        %v824 = vpack.c.b16 %v814, %v813
        %v825 = vpack.c.b16 %v816, %v815
        %v826 = vpack.c.b16 %v818, %v817
        %835 = vmatprep.subr.bf16.mxu0 0
        %836 = vmatpush1.bf16.msra.mxu0 %v819
        %837 = vmatprep.subr.bf16.mxu0 0
        %838 = vmatpush1.bf16.msra.mxu0 %v820
        %839 = vmatprep.subr.bf16.mxu0 0
        %840 = vmatpush1.bf16.msra.mxu0 %v821
        %841 = vmatprep.subr.bf16.mxu0 0
        %842 = vmatpush1.bf16.msra.mxu0 %v822
        %843 = vmatprep.subr.bf16.mxu0 0
        %844 = vmatpush1.bf16.msra.mxu0 %v823
        %845 = vmatprep.subr.bf16.mxu0 0
        %846 = vmatpush1.bf16.msra.mxu0 %v824
        %847 = vmatprep.subr.bf16.mxu0 0
        %848 = vmatpush1.bf16.msra.mxu0 %v825
        %849 = vmatprep.subr.bf16.mxu0 0
        %850 = vmatpush1.bf16.msra.mxu0 %v826
        %851 = vmatprep.subr.bf16.mxu0 0
        %852 = vmatpush1.bf16.msra.mxu0 0
        %853 = vmatprep.subr.bf16.mxu0 0
        %854 = vmatpush1.bf16.msra.mxu0 0
        %855 = vmatprep.subr.bf16.mxu0 0
        %856 = vmatpush1.bf16.msra.mxu0 0
        %857 = vmatprep.subr.bf16.mxu0 0
        %858 = vmatpush1.bf16.msra.mxu0 0
        %859 = vmatprep.subr.bf16.mxu0 0
        %860 = vmatpush1.bf16.msra.mxu0 0
        %861 = vmatprep.subr.bf16.mxu0 0
        %862 = vmatpush1.bf16.msra.mxu0 0
        %863 = vmatprep.subr.bf16.mxu0 0
        %864 = vmatpush1.bf16.msra.mxu0 0
        %865 = vmatprep.subr.bf16.mxu0 0
        %866 = vmatpush1.bf16.msra.mxu0 0
        %867 = vmatprep.mubr.bf16.mxu0 0
        %868 = vmatmul.mubr.bf16.gmra.mrb[0].mxu0 %v785
        %v869 = vpop.f32.mrb[0].mxu0
        %v870 = vadd.f32 0.0, %v869
        %v871 = vpop.f32.mrb[0].mxu0
        %v872 = vpop.f32.mrb[0].mxu0
        %v873 = vadd.f32 0.0, %v872
        %v874 = vpop.f32.mrb[0].mxu0
        %875 = vdwg.mxu0
        %v893 = vunpack.c.l.b16 %v732
        %v894 = vunpack.c.l.b16 %v733
        %v895 = vunpack.c.l.b16 %v734
        %v896 = vunpack.c.l.b16 %v735
        %v897 = vunpack.c.l.b16 %v736
        %v898 = vunpack.c.l.b16 %v737
        %v899 = vunpack.c.l.b16 %v738
        %v900 = vunpack.c.l.b16 %v739
        %v901 = vunpack.c.l.b16 %v740
        %v902 = vunpack.c.l.b16 %v741
        %v903 = vunpack.c.l.b16 %v742
        %v904 = vunpack.c.l.b16 %v743
        %v905 = vunpack.c.l.b16 %v744
        %v906 = vunpack.c.l.b16 %v745
        %v907 = vunpack.c.l.b16 %v746
        %v908 = vunpack.c.l.b16 %v747
        %v909 = vpack.c.b16 %v894, %v893
        %v910 = vpack.c.b16 %v896, %v895
        %v911 = vpack.c.b16 %v898, %v897
        %v912 = vpack.c.b16 %v900, %v899
        %v913 = vpack.c.b16 %v902, %v901
        %v914 = vpack.c.b16 %v904, %v903
        %v915 = vpack.c.b16 %v906, %v905
        %v916 = vpack.c.b16 %v908, %v907
        %925 = vmatprep.subr.bf16.mxu0 0
        %926 = vmatpush1.bf16.msra.mxu0 %v909
        %927 = vmatprep.subr.bf16.mxu0 0
        %928 = vmatpush1.bf16.msra.mxu0 %v910
        %929 = vmatprep.subr.bf16.mxu0 0
        %930 = vmatpush1.bf16.msra.mxu0 %v911
        %931 = vmatprep.subr.bf16.mxu0 0
        %932 = vmatpush1.bf16.msra.mxu0 %v912
        %933 = vmatprep.subr.bf16.mxu0 0
        %934 = vmatpush1.bf16.msra.mxu0 %v913
        %935 = vmatprep.subr.bf16.mxu0 0
        %936 = vmatpush1.bf16.msra.mxu0 %v914
        %937 = vmatprep.subr.bf16.mxu0 0
        %938 = vmatpush1.bf16.msra.mxu0 %v915
        %939 = vmatprep.subr.bf16.mxu0 0
        %940 = vmatpush1.bf16.msra.mxu0 %v916
        %941 = vmatprep.subr.bf16.mxu0 0
        %942 = vmatpush1.bf16.msra.mxu0 0
        %943 = vmatprep.subr.bf16.mxu0 0
        %944 = vmatpush1.bf16.msra.mxu0 0
        %945 = vmatprep.subr.bf16.mxu0 0
        %946 = vmatpush1.bf16.msra.mxu0 0
        %947 = vmatprep.subr.bf16.mxu0 0
        %948 = vmatpush1.bf16.msra.mxu0 0
        %949 = vmatprep.subr.bf16.mxu0 0
        %950 = vmatpush1.bf16.msra.mxu0 0
        %951 = vmatprep.subr.bf16.mxu0 0
        %952 = vmatpush1.bf16.msra.mxu0 0
        %953 = vmatprep.subr.bf16.mxu0 0
        %954 = vmatpush1.bf16.msra.mxu0 0
        %955 = vmatprep.subr.bf16.mxu0 0
        %956 = vmatpush1.bf16.msra.mxu0 0
        %957 = vmatprep.mubr.bf16.mxu0 0
        %958 = vmatmul.mubr.bf16.gmra.mrb[0].mxu0 %v772
        %v959 = vpop.f32.mrb[0].mxu0
        %v960 = vadd.f32 %v870, %v959
        %v961 = vpop.f32.mrb[0].mxu0
        %v962 = vpop.f32.mrb[0].mxu0
        %v963 = vadd.f32 %v873, %v962
        %v964 = vpop.f32.mrb[0].mxu0
        %965 = vdwg.mxu0
        %v966 = vld [vmem:[#allocation2] sm:$0xe]
        %s967 = scalar_lea.vmem [#allocation6], 128
        %v968 = vld [vmem:[%s967] sm:$0xf]
        %v969 = vld [vmem:[%s967 + $0x4] sm:$0xf]
        %v970 = vld [vmem:[%s967 + $0x8] sm:$0xf]
        %v971 = vld [vmem:[%s967 + $0xc] sm:$0xf]
        %v972 = vld [vmem:[%s967 + $0x10] sm:$0xf]
        %v973 = vld [vmem:[%s967 + $0x14] sm:$0xf]
        %v974 = vld [vmem:[%s967 + $0x18] sm:$0xf]
        %v975 = vld [vmem:[%s967 + $0x1c] sm:$0xf]
        %v976 = vld [vmem:[%s967 + $0x20] sm:$0xf]
        %v977 = vld [vmem:[%s967 + $0x24] sm:$0xf]
        %v978 = vld [vmem:[%s967 + $0x28] sm:$0xf]
        %v979 = vld [vmem:[%s967 + $0x2c] sm:$0xf]
        %v980 = vld [vmem:[%s967 + $0x30] sm:$0xf]
        %v981 = vld [vmem:[%s967 + $0x34] sm:$0xf]
        %v982 = vld [vmem:[%s967 + $0x38] sm:$0xf]
        %v983 = vld [vmem:[%s967 + $0x3c] sm:$0xf]
        %v985 = vunpack.c.l.b16 %v966
        %v986 = vpack.c.b16 %v770, %v985
        %v987 = vrot.slane %v986, 1
        %v988 = vrot.slane %v773, 1
        %v989 = vsel %vm577, %v987, %v988
        %v1007 = vunpack.c.l.b16 %v968
        %v1008 = vunpack.c.l.b16 %v969
        %v1009 = vunpack.c.l.b16 %v970
        %v1010 = vunpack.c.l.b16 %v971
        %v1011 = vunpack.c.l.b16 %v972
        %v1012 = vunpack.c.l.b16 %v973
        %v1013 = vunpack.c.l.b16 %v974
        %v1014 = vunpack.c.l.b16 %v975
        %v1015 = vunpack.c.l.b16 %v976
        %v1016 = vunpack.c.l.b16 %v977
        %v1017 = vunpack.c.l.b16 %v978
        %v1018 = vunpack.c.l.b16 %v979
        %v1019 = vunpack.c.l.b16 %v980
        %v1020 = vunpack.c.l.b16 %v981
        %v1021 = vunpack.c.l.b16 %v982
        %v1022 = vunpack.c.l.b16 %v983
        %v1023 = vpack.c.b16 %v1008, %v1007
        %v1024 = vpack.c.b16 %v1010, %v1009
        %v1025 = vpack.c.b16 %v1012, %v1011
        %v1026 = vpack.c.b16 %v1014, %v1013
        %v1027 = vpack.c.b16 %v1016, %v1015
        %v1028 = vpack.c.b16 %v1018, %v1017
        %v1029 = vpack.c.b16 %v1020, %v1019
        %v1030 = vpack.c.b16 %v1022, %v1021
        %1039 = vmatprep.subr.bf16.mxu0 0
        %1040 = vmatpush1.bf16.msra.mxu0 %v1023
        %1041 = vmatprep.subr.bf16.mxu0 0
        %1042 = vmatpush1.bf16.msra.mxu0 %v1024
        %1043 = vmatprep.subr.bf16.mxu0 0
        %1044 = vmatpush1.bf16.msra.mxu0 %v1025
        %1045 = vmatprep.subr.bf16.mxu0 0
        %1046 = vmatpush1.bf16.msra.mxu0 %v1026
        %1047 = vmatprep.subr.bf16.mxu0 0
        %1048 = vmatpush1.bf16.msra.mxu0 %v1027
        %1049 = vmatprep.subr.bf16.mxu0 0
        %1050 = vmatpush1.bf16.msra.mxu0 %v1028
        %1051 = vmatprep.subr.bf16.mxu0 0
        %1052 = vmatpush1.bf16.msra.mxu0 %v1029
        %1053 = vmatprep.subr.bf16.mxu0 0
        %1054 = vmatpush1.bf16.msra.mxu0 %v1030
        %1055 = vmatprep.subr.bf16.mxu0 0
        %1056 = vmatpush1.bf16.msra.mxu0 0
        %1057 = vmatprep.subr.bf16.mxu0 0
        %1058 = vmatpush1.bf16.msra.mxu0 0
        %1059 = vmatprep.subr.bf16.mxu0 0
        %1060 = vmatpush1.bf16.msra.mxu0 0
        %1061 = vmatprep.subr.bf16.mxu0 0
        %1062 = vmatpush1.bf16.msra.mxu0 0
        %1063 = vmatprep.subr.bf16.mxu0 0
        %1064 = vmatpush1.bf16.msra.mxu0 0
        %1065 = vmatprep.subr.bf16.mxu0 0
        %1066 = vmatpush1.bf16.msra.mxu0 0
        %1067 = vmatprep.subr.bf16.mxu0 0
        %1068 = vmatpush1.bf16.msra.mxu0 0
        %1069 = vmatprep.subr.bf16.mxu0 0
        %1070 = vmatpush1.bf16.msra.mxu0 0
        %1071 = vmatprep.mubr.bf16.mxu0 0
        %1072 = vmatmul.mubr.bf16.gmra.mrb[0].mxu0 %v989
        %v1073 = vpop.f32.mrb[0].mxu0
        %v1074 = vadd.f32 0.0, %v1073
        %v1075 = vpop.f32.mrb[0].mxu0
        %v1076 = vpop.f32.mrb[0].mxu0
        %v1077 = vadd.f32 0.0, %v1076
        %v1078 = vpop.f32.mrb[0].mxu0
        %1079 = vdwg.mxu0
        %v1080 = vadd.f32 %v960, %v1074
        %v1081 = vadd.f32 %v963, %v1077
        %v1082 = vld [vmem:[%s5] sm:$0x1]
        %v1084 = vlaneseq
        %v1085 = vshrl.u32 %v1084, 7
        %v1086 = vsub.s32 0, %v1085
        %v1087 = vrot.slane %v1082, %v1086
        %v1089 = vmul.f32 %v1080, %v1087
        %v1090 = vmul.f32 %v1081, %v1087
        %v1091 = vld [vmem:[%s6] sm:$0x1]
        %v1093 = vlaneseq
        %v1094 = vshrl.u32 %v1093, 7
        %v1095 = vsub.s32 0, %v1094
        %v1096 = vrot.slane %v1091, %v1095
        %v1098 = vadd.f32 %v1089, %v1096
        %v1099 = vadd.f32 %v1090, %v1096
        %v1100 = vld [vmem:[%s306] sm:$0xf]
        %v1101 = vld [vmem:[%s306 + $0x4] sm:$0xf]
        %v1102 = vld [vmem:[%s306 + $0x8] sm:$0x1]
        %v1103 = vunpack.c.l.bf16 %v1100
        %v1104 = vunpack.c.l.bf16 %v1101
        %v1105 = vunpack.c.l.bf16 %v1102
        %vm1109 = vcmask 1046528
        %v1110 = vrot.slane %v1103, 1
        %v1111 = vrot.slane %v1104, 1
        %v1112 = vsel %vm1109, %v1110, %v1111
        %v1113 = vrot.slane %v1105, 1
        %v1114 = vsel %vm1109, %v1111, %v1113
        %v1117 = vadd.f32 %v1098, %v1112
        %v1118 = vadd.f32 %v1099, %v1114
        %v1119 = vmax.f32 %v1117, 0.0
        %v1120 = vmax.f32 %v1118, 0.0
        %1121 = vst [vmem:[%s301] sm:$0xff] %v1119
        %1122 = vst [vmem:[%s301 + $0x8] sm:$0xff] %v1120
        %s1123 = sand.u32 %s183, 1
        %s1124 = scalar_lea.sflag [#allocation5], %s1123
        %s1125 = sand.u32 %s183, 1
        %s1126 = smul.addr %s1125, 16
        %s1127 = scalar_lea.vmem [#allocation8], %s1126
        // Predicated region
        $region57: #{tpu_custom_call.1} parent=47 // pred_check
          %p1128 = pneg %p193
        $region58: #{tpu_custom_call.1} parent=47 // pred_check_branch
          %1130 = sbr.rel (%p1128) target = $region60
        $region59: #{tpu_custom_call.1} parent=47 // pred_region
          %s1132 = ssub.s32 256, 256
          %1133 = vsyncadd %s1124, %s1132
          %s1134 = smul.addr %s23, 2
          %s1135 = smul.addr %s1134, 128
          %s1136 = scalar_lea.hbm %s7, %s1135
          %s1137 = sshll.u32 %s1127, 4
          %s1138 = int_to_ptr.vmem [resolvable:$true] %s1137
          %1143 = dma.vmem_to_hbm [thread:$0]  %s1138, 256, %s1136, %s1124, 128, 128, 8
        $region60: #{tpu_custom_call.1} parent=47 // pred_fallthru
          _
      $region48: #{tpu_custom_call.1} parent=5 // pred_fallthru
        _
      %p1144 = scmp.le.s32.totalorder 2, %s18
      // Predicated region
      $region61: #{tpu_custom_call.1} parent=5 // pred_check
        %p1145 = pneg %p1144
      $region62: #{tpu_custom_call.1} parent=5 // pred_check_branch
        %1147 = sbr.rel (%p1145) target = $region64
      $region63: #{tpu_custom_call.1} parent=5 // pred_region
        %s1148 = ssub.s32 %s18, 2
        // Predicated region
        $region65: #{tpu_custom_call.1} parent=63 // pred_check
          %p1149 = pneg %p199
        $region66: #{tpu_custom_call.1} parent=63 // pred_check_branch
          %1151 = sbr.rel (%p1149) target = $region68
        $region67: #{tpu_custom_call.1} parent=63 // pred_region
          %s1152 = sand.u32 %s184, 1
          %s1153 = scalar_lea.sflag [#allocation5], %s1152
          %s1154 = sand.u32 %s184, 1
          %s1155 = smul.addr %s1154, 16
          %s1156 = scalar_lea.vmem [#allocation8], %s1155
          %1157 = dma.done %s1153, 256
        $region68: #{tpu_custom_call.1} parent=63 // pred_fallthru
          _
      $region64: #{tpu_custom_call.1} parent=5 // pred_fallthru
        _
    $region6: #{tpu_custom_call.1} parent=1 // loop_footer
      %s22 = sadd.s32 1, %s18
    $region7: #{tpu_custom_call.1} parent=1 // loop_footer_branch
      %17 = sbr.rel target = $region3
    $region8: #{tpu_custom_call.1} parent=1 // loop_exit
      _
    %1158 = vsyncpa [#allocation4], 1
    %s1159 = scalar_lea.sflag [#allocation4], 1
    %1160 = vsyncpa %s1159, 1
    %1161 = vsyncpa [#allocation7], 1
    %1162 = vsyncpa [#allocation5], 1
    %s1163 = scalar_lea.sflag [#allocation5], 1
    %1164 = vsyncpa %s1163, 1

</llo_original>
